<compile_context>
chip_gen: v5e
topology: v5e:2x2
jax: 0.10.0
libtpu: 0.0.40
codegen_flags: <defaults>
</compile_context>

<pallas_src>
import jax
import jax.numpy as jnp
from jax.experimental import pallas as pl
from jax.experimental.pallas import tpu as pltpu


def _round_up(x, m):
    return (x + m - 1) // m * m


def _mlp_kernel(u_ref, m_ref, w1u_ref, w1m_ref, b1_ref, w2_ref, b2_ref, o_ref):
    # fc1 on split weights: concat(u, m) @ W1 == u @ W1[:D] + m @ W1[D:]
    h = jnp.dot(u_ref[...], w1u_ref[...], preferred_element_type=jnp.float32)
    h = h + jnp.dot(m_ref[...], w1m_ref[...], preferred_element_type=jnp.float32)
    h = h + b1_ref[...]                    # [TB, H] + [1, H]
    h = jnp.maximum(h, 0.0)                # ReLU (VPU)
    # fc2: an N=1 MXU matmul would use <1% of the systolic array and still pay
    # full MRF/MRB latency; do it as VPU multiply + XLU lane-reduce instead.
    o = jnp.sum(h * w2_ref[...], axis=-1, keepdims=True)   # [TB, 1]
    o = o + b2_ref[0, 0]                   # scalar bias read from SMEM
    o_ref[...] = o.astype(o_ref.dtype)


def mlp_forward(u, m, w1u, w1m, b1, w2_row, b2, *, block_b=128):
    """u, m: [B, D] f32 -> [B, 1] f32.  Fused fc1 + ReLU + fc2."""
    B, D = u.shape
    H = w1u.shape[1]

    # Tile the batch.  For tiny batches don't over-tile (per-grid-step overhead
    # ~0.35us); just round up to the 8-sublane requirement.
    tb = min(block_b, _round_up(B, 8))
    Bp = _round_up(B, tb)
    if Bp != B:
        pad = Bp - B
        u = jnp.pad(u, ((0, pad), (0, 0)))
        m = jnp.pad(m, ((0, pad), (0, 0)))

    out = pl.pallas_call(
        _mlp_kernel,
        out_shape=jax.ShapeDtypeStruct((Bp, 1), jnp.float32),
        grid_spec=pltpu.PrefetchScalarGridSpec(
            num_scalar_prefetch=0,
            grid=(Bp // tb,),
            in_specs=[
                pl.BlockSpec((tb, D), lambda i: (i, 0)),    # u tile (streamed)
                pl.BlockSpec((tb, D), lambda i: (i, 0)),    # m tile (streamed)
                pl.BlockSpec((D, H), lambda i: (0, 0)),     # W1[:D] (resident)
                pl.BlockSpec((D, H), lambda i: (0, 0)),     # W1[D:] (resident)
                pl.BlockSpec((1, H), lambda i: (0, 0)),     # b1     (resident)
                pl.BlockSpec((1, H), lambda i: (0, 0)),     # w2 row (resident)
                pl.BlockSpec(memory_space=pltpu.MemorySpace.SMEM),  # b2 scalar
            ],
            out_specs=pl.BlockSpec((tb, 1), lambda i: (i, 0)),
        ),
        compiler_params=pltpu.CompilerParams(
            dimension_semantics=("parallel",),   # megacore-shard batch tiles
            vmem_limit_bytes=32 * 1024 * 1024,   # safe on v7x's 64 MiB VMEM
        ),
    )(u, m, w1u, w1m, b1, w2_row, b2)
    return out[:B]


class PallasRecsysModel:
    """JAX/Pallas equivalent of the PyTorch Model."""

    def __init__(self, n_users, n_items, embed_dim, n_hidden=1024, *, key):
        self.N, self.M, self.D, self.H = n_users, n_items, embed_dim, n_hidden
        k0, k1, k2, k3, k4, k5 = jax.random.split(key, 6)

        # Embedding tables: randn * 0.01 (as in the PyTorch __init__).
        self.u_emb = 0.01 * jax.random.normal(k0, (self.N, self.D), jnp.float32)
        self.m_emb = 0.01 * jax.random.normal(k1, (self.M, self.D), jnp.float32)

        # Linear layers: PyTorch default init U(-1/sqrt(fan_in), 1/sqrt(fan_in)).
        fan1 = 2 * self.D
        lim1 = 1.0 / jnp.sqrt(fan1)
        w1 = jax.random.uniform(k2, (fan1, self.H), jnp.float32, -lim1, lim1)
        self.w1u = w1[: self.D]              # [D, H]
        self.w1m = w1[self.D:]               # [D, H]
        self.b1 = jax.random.uniform(k3, (1, self.H), jnp.float32, -lim1, lim1)

        fan2 = self.H
        lim2 = 1.0 / jnp.sqrt(fan2)
        self.w2_row = jax.random.uniform(k4, (1, fan2), jnp.float32, -lim2, lim2)
        self.b2 = jax.random.uniform(k5, (1, 1), jnp.float32, -lim2, lim2)

    def __call__(self, u_idx, m_idx):
        # TODO(synk): fuse the embedding gather into the kernel (scalar-prefetched
        # indices + manual DMA gather) to kill the extra activation HBM round trip
        # when the tables are large; kept as XLA glue here.
        u = self.u_emb[u_idx]                       # [B, D]
        m = self.m_emb[m_idx]                       # [B, D]
        # Fused MLP hot path in Pallas (no concat: W1 is split inside the kernel).
        return mlp_forward(u, m, self.w1u, self.w1m, self.b1,
                           self.w2_row, self.b2)    # [B, 1]


def _reference(model, u_idx, m_idx):
    u = model.u_emb[u_idx]
    m = model.m_emb[m_idx]
    x = jnp.concatenate([u, m], axis=1)
    w1 = jnp.concatenate([model.w1u, model.w1m], axis=0)
    h = jnp.maximum(x @ w1 + model.b1, 0.0)
    return h @ model.w2_row.T + model.b2


if __name__ == "__main__":
    key = jax.random.PRNGKey(0)
    k_model, k_u, k_m, k_u2, k_m2 = jax.random.split(key, 5)

    n_users, n_items, embed_dim, n_hidden = 16, 24, 32, 128
    model = PallasRecsysModel(n_users, n_items, embed_dim, n_hidden, key=k_model)

    # Tiny batch (single grid step, no tiling overhead).
    batch = 8
    u_idx = jax.random.randint(k_u, (batch,), 0, n_users)
    m_idx = jax.random.randint(k_m, (batch,), 0, n_items)
    out = jax.block_until_ready(model(u_idx, m_idx))
    ref = _reference(model, u_idx, m_idx)
    assert out.shape == (batch, 1)
    assert jnp.allclose(out, ref, atol=1e-4, rtol=1e-4)

    # Larger batch (exercises padding + multi-step parallel grid).
    batch2 = 200
    u_idx2 = jax.random.randint(k_u2, (batch2,), 0, n_users)
    m_idx2 = jax.random.randint(k_m2, (batch2,), 0, n_items)
    out2 = jax.block_until_ready(model(u_idx2, m_idx2))
    ref2 = _reference(model, u_idx2, m_idx2)
    assert out2.shape == (batch2, 1)
    assert jnp.allclose(out2, ref2, atol=1e-4, rtol=1e-4)

    print("KERNEL_OK")
</pallas_src>

<mosaic_0001>
module attributes {stable_mosaic.version = 11 : i64} {
  func.func @_mlp_kernel(%arg0: i32, %arg1: memref<8x32xf32, #tpu.memory_space<vmem>>, %arg2: memref<8x32xf32, #tpu.memory_space<vmem>>, %arg3: memref<32x128xf32, #tpu.memory_space<vmem>>, %arg4: memref<32x128xf32, #tpu.memory_space<vmem>>, %arg5: memref<1x128xf32, #tpu.memory_space<vmem>>, %arg6: memref<1x128xf32, #tpu.memory_space<vmem>>, %arg7: memref<1x1xf32, #tpu.memory_space<smem>>, %arg8: memref<8x1xf32, #tpu.memory_space<vmem>>) attributes {dimension_semantics = [#tpu.dimension_semantics<parallel>], iteration_bounds = array<i64: 1>, scalar_prefetch = 0 : i64, scratch_operands = 0 : i64, tpu.core_type = #tpu.core_type<tc>, window_params = [{transform_indices = @transform_0, window_bounds = array<i64: 8, 32>}, {transform_indices = @transform_1, window_bounds = array<i64: 8, 32>}, {pipeline_mode = #tpu.pipeline_mode<synchronous>, transform_indices = @transform_2, window_bounds = array<i64: 32, 128>}, {pipeline_mode = #tpu.pipeline_mode<synchronous>, transform_indices = @transform_3, window_bounds = array<i64: 32, 128>}, {pipeline_mode = #tpu.pipeline_mode<synchronous>, transform_indices = @transform_4, window_bounds = array<i64: 1, 128>}, {pipeline_mode = #tpu.pipeline_mode<synchronous>, transform_indices = @transform_5, window_bounds = array<i64: 1, 128>}, {transform_indices = @transform_6, window_bounds = array<i64: 1, 1>}, {transform_indices = @transform_7, window_bounds = array<i64: 8, 1>}]} {
    %c0 = arith.constant 0 : index
    %c0_0 = arith.constant 0 : index
    %0 = vector.load %arg1[%c0, %c0_0] : memref<8x32xf32, #tpu.memory_space<vmem>>, vector<8x32xf32>
    %c0_1 = arith.constant 0 : index
    %c0_2 = arith.constant 0 : index
    %1 = vector.load %arg3[%c0_1, %c0_2] : memref<32x128xf32, #tpu.memory_space<vmem>>, vector<32x128xf32>
    %cst = arith.constant dense<0.000000e+00> : vector<8x128xf32>
    %2 = tpu.matmul %0, %1, %cst {dimension_numbers = #tpu.dot_dimension_numbers<[1], [0], [0], [1], [0, 0, 1, 1], [], []>} : vector<8x32xf32>, vector<32x128xf32>, vector<8x128xf32> -> vector<8x128xf32>
    %c0_3 = arith.constant 0 : index
    %c0_4 = arith.constant 0 : index
    %3 = vector.load %arg2[%c0_3, %c0_4] : memref<8x32xf32, #tpu.memory_space<vmem>>, vector<8x32xf32>
    %c0_5 = arith.constant 0 : index
    %c0_6 = arith.constant 0 : index
    %4 = vector.load %arg4[%c0_5, %c0_6] : memref<32x128xf32, #tpu.memory_space<vmem>>, vector<32x128xf32>
    %cst_7 = arith.constant dense<0.000000e+00> : vector<8x128xf32>
    %5 = tpu.matmul %3, %4, %cst_7 {dimension_numbers = #tpu.dot_dimension_numbers<[1], [0], [0], [1], [0, 0, 1, 1], [], []>} : vector<8x32xf32>, vector<32x128xf32>, vector<8x128xf32> -> vector<8x128xf32>
    %6 = arith.addf %2, %5 : vector<8x128xf32>
    %c0_8 = arith.constant 0 : index
    %c0_9 = arith.constant 0 : index
    %7 = vector.load %arg5[%c0_8, %c0_9] : memref<1x128xf32, #tpu.memory_space<vmem>>, vector<1x128xf32>
    %8 = vector.broadcast %7 : vector<1x128xf32> to vector<8x128xf32>
    %9 = arith.addf %6, %8 : vector<8x128xf32>
    %cst_10 = arith.constant 0.000000e+00 : f32
    %10 = vector.broadcast %cst_10 : f32 to vector<8x128xf32>
    %11 = arith.maximumf %9, %10 : vector<8x128xf32>
    %c0_11 = arith.constant 0 : index
    %c0_12 = arith.constant 0 : index
    %12 = vector.load %arg6[%c0_11, %c0_12] : memref<1x128xf32, #tpu.memory_space<vmem>>, vector<1x128xf32>
    %13 = vector.broadcast %12 : vector<1x128xf32> to vector<8x128xf32>
    %14 = arith.mulf %11, %13 : vector<8x128xf32>
    %cst_13 = arith.constant dense<0.000000e+00> : vector<8xf32>
    %15 = vector.multi_reduction <add>, %14, %cst_13 [1] : vector<8x128xf32> to vector<8xf32>
    %16 = vector.shape_cast %15 : vector<8xf32> to vector<8x1xf32>
    %c0_14 = arith.constant 0 : index
    %c0_15 = arith.constant 0 : index
    %17 = memref.load %arg7[%c0_14, %c0_15] : memref<1x1xf32, #tpu.memory_space<smem>>
    %18 = vector.broadcast %17 : f32 to vector<8x1xf32>
    %19 = arith.addf %16, %18 : vector<8x1xf32>
    %c0_16 = arith.constant 0 : index
    %c0_17 = arith.constant 0 : index
    %20 = vector.load %arg8[%c0_16, %c0_17] : memref<8x1xf32, #tpu.memory_space<vmem>>, vector<8x1xf32>
    tpu.vector_store %arg8[%c0_16, %c0_17], %19 {strides = array<i32>} : memref<8x1xf32, #tpu.memory_space<vmem>>, vector<8x1xf32>,
    return
  }
  func.func @transform_0(%arg0: i32) -> (i32, i32) {
    %c0_i32 = arith.constant 0 : i32
    %c0_i32_0 = arith.constant 0 : i32
    return %arg0, %c0_i32 : i32, i32
  }
  func.func @transform_1(%arg0: i32) -> (i32, i32) {
    %c0_i32 = arith.constant 0 : i32
    %c0_i32_0 = arith.constant 0 : i32
    return %arg0, %c0_i32 : i32, i32
  }
  func.func @transform_2(%arg0: i32) -> (i32, i32) {
    %c0_i32 = arith.constant 0 : i32
    %c0_i32_0 = arith.constant 0 : i32
    %c0_i32_1 = arith.constant 0 : i32
    return %c0_i32, %c0_i32_0 : i32, i32
  }
  func.func @transform_3(%arg0: i32) -> (i32, i32) {
    %c0_i32 = arith.constant 0 : i32
    %c0_i32_0 = arith.constant 0 : i32
    %c0_i32_1 = arith.constant 0 : i32
    return %c0_i32, %c0_i32_0 : i32, i32
  }
  func.func @transform_4(%arg0: i32) -> (i32, i32) {
    %c0_i32 = arith.constant 0 : i32
    %c0_i32_0 = arith.constant 0 : i32
    %c0_i32_1 = arith.constant 0 : i32
    return %c0_i32, %c0_i32_0 : i32, i32
  }
  func.func @transform_5(%arg0: i32) -> (i32, i32) {
    %c0_i32 = arith.constant 0 : i32
    %c0_i32_0 = arith.constant 0 : i32
    %c0_i32_1 = arith.constant 0 : i32
    return %c0_i32, %c0_i32_0 : i32, i32
  }
  func.func @transform_6(%arg0: i32) -> (i32, i32) {
    %c0_i32 = arith.constant 0 : i32
    %c0_i32_0 = arith.constant 0 : i32
    %c0_i32_1 = arith.constant 0 : i32
    return %c0_i32, %c0_i32_0 : i32, i32
  }
  func.func @transform_7(%arg0: i32) -> (i32, i32) {
    %c0_i32 = arith.constant 0 : i32
    %c0_i32_0 = arith.constant 0 : i32
    return %arg0, %c0_i32 : i32, i32
  }
}

</mosaic_0001>

<llo_original>
// kernel: tpu_custom_call.1
$region0: #{tpu_custom_call.1}
  #allocation0 [shape = 'u32[]', space=smem, size = 0x4, offset = 0x4, fixed_abs, tag = 'smem constant byte address 0x4 - core index']
  #allocation1 [shape = 'u32[72,128]{1,0:T(1,128)}', space=vmem, size = 0x9000, scoped, tag = 'internal scratch']
  #allocation2 [shape = 'f32[1,1]{1,0:T(1,128)S(6)}', space=smem, size = 0x200, scoped, tag = 'scoped memory for tpu_custom_call.1']
  %s0 = inlined_call_operand.hbm [shape: f32[8,32], index: 0, kind: input, shape index: {}]
  %s1 = inlined_call_operand.hbm [shape: f32[8,32], index: 1, kind: input, shape index: {}]
  %s2 = inlined_call_operand.hbm [shape: f32[32,128], index: 2, kind: input, shape index: {}]
  %s3 = inlined_call_operand.hbm [shape: f32[32,128], index: 3, kind: input, shape index: {}]
  %s4 = inlined_call_operand.vmem [shape: f32[1,128], index: 4, kind: input, shape index: {}]
  %s5 = inlined_call_operand.vmem [shape: f32[1,128], index: 5, kind: input, shape index: {}]
  %s6 = inlined_call_operand.<no memory space> [shape: f32[1,1], index: 6, kind: input, shape index: {}]
  %s7 = inlined_call_operand.vmem [shape: f32[8,1], index: 7, kind: output, shape index: {}]
  %s8 = sld [smem:[#allocation0]]
  $region54: #{tpu_custom_call.1} parent=0
    _
  %s10 = ssub.s32 1, %s8
  %s11 = scalar_select 0, %s10, %s8
  %12 = sst [smem:[#allocation2]] %s6
  $region1: #{tpu_custom_call.1} parent=0
    #allocation3 [shape = 'u8[4096]{0}', space=vmem, size = 0x1000, scoped, tag = 'input window, operand 0, single buffered']
    #allocation4 [shape = 's32[1]{0}', space=sflag, size = 0x4, scoped, tag = 'scoped memory for tpu_custom_call.1']
    #allocation5 [shape = 'u8[4096]{0}', space=vmem, size = 0x1000, scoped, tag = 'input window, operand 1, single buffered']
    #allocation6 [shape = 's32[1]{0}', space=sflag, size = 0x4, scoped, tag = 'scoped memory for tpu_custom_call.1']
    #allocation7 [shape = 'u8[16384]{0}', space=vmem, size = 0x4000, scoped, tag = 'input window, operand 2, single buffered']
    #allocation8 [shape = 'u8[16384]{0}', space=vmem, size = 0x4000, scoped, tag = 'input window, operand 3, single buffered']
    #allocation9 [shape = 's32[1]{0}', space=sflag, size = 0x4, scoped, tag = 'scoped memory for tpu_custom_call.1']
    %13 = vsyncpa [#allocation4], 0
    %14 = vsyncpa [#allocation6], 0
    %15 = vsyncpa [#allocation9], 0
    // Predicated region
    $region2: #{tpu_custom_call.1} parent=1 // pred_check
      _
    $region3: #{tpu_custom_call.1} parent=1 // pred_check_branch
      %17 = sbr.rel (0) target = $region5
    $region4: #{tpu_custom_call.1} parent=1 // pred_region
      %19 = vsyncadd [#allocation4], 0
      %s21 = sshll.u32 %s0, 4
      %s22 = int_to_ptr.hbm [resolvable:$true] %s21
      %s23 = sshll.u32 [#allocation3], 4
      %s24 = int_to_ptr.vmem [resolvable:$true] %s23
      %26 = dma.hbm_to_vmem [thread:$0]  %s22, 128, %s24, [#allocation4]
    $region5: #{tpu_custom_call.1} parent=1 // pred_fallthru
      _
    // Predicated region
    $region6: #{tpu_custom_call.1} parent=1 // pred_check
      _
    $region7: #{tpu_custom_call.1} parent=1 // pred_check_branch
      %28 = sbr.rel (0) target = $region9
    $region8: #{tpu_custom_call.1} parent=1 // pred_region
      %30 = vsyncadd [#allocation6], 0
      %s32 = sshll.u32 %s1, 4
      %s33 = int_to_ptr.hbm [resolvable:$true] %s32
      %s34 = sshll.u32 [#allocation5], 4
      %s35 = int_to_ptr.vmem [resolvable:$true] %s34
      %37 = dma.hbm_to_vmem [thread:$0]  %s33, 128, %s35, [#allocation6]
    $region9: #{tpu_custom_call.1} parent=1 // pred_fallthru
      _
    // Predicated region
    $region10: #{tpu_custom_call.1} parent=1 // pred_check
      _
    $region11: #{tpu_custom_call.1} parent=1 // pred_check_branch
      %39 = sbr.rel (0) target = $region13
    $region12: #{tpu_custom_call.1} parent=1 // pred_region
      %41 = vsyncadd [#allocation6], 0
      %s42 = sshll.u32 %s2, 4
      %s43 = int_to_ptr.hbm [resolvable:$true] %s42
      %s44 = sshll.u32 [#allocation7], 4
      %s45 = int_to_ptr.vmem [resolvable:$true] %s44
      %50 = dma.hbm_to_vmem [thread:$0]  %s43, 512, %s45, [#allocation6], 128, 128, 8
    $region13: #{tpu_custom_call.1} parent=1 // pred_fallthru
      _
    // Predicated region
    $region14: #{tpu_custom_call.1} parent=1 // pred_check
      _
    $region15: #{tpu_custom_call.1} parent=1 // pred_check_branch
      %52 = sbr.rel (0) target = $region17
    $region16: #{tpu_custom_call.1} parent=1 // pred_region
      %54 = vsyncadd [#allocation9], 0
      %s55 = sshll.u32 %s3, 4
      %s56 = int_to_ptr.hbm [resolvable:$true] %s55
      %s57 = sshll.u32 [#allocation8], 4
      %s58 = int_to_ptr.vmem [resolvable:$true] %s57
      %63 = dma.hbm_to_vmem [thread:$0]  %s56, 512, %s58, [#allocation9], 128, 128, 8
    $region17: #{tpu_custom_call.1} parent=1 // pred_fallthru
      _
    // Predicated region
    $region18: #{tpu_custom_call.1} parent=1 // pred_check
      _
    $region19: #{tpu_custom_call.1} parent=1 // pred_check_branch
      %65 = sbr.rel (0) target = $region21
    $region20: #{tpu_custom_call.1} parent=1 // pred_region
      _
    $region21: #{tpu_custom_call.1} parent=1 // pred_fallthru
      _
    // Predicated region
    $region22: #{tpu_custom_call.1} parent=1 // pred_check
      _
    $region23: #{tpu_custom_call.1} parent=1 // pred_check_branch
      %67 = sbr.rel (0) target = $region25
    $region24: #{tpu_custom_call.1} parent=1 // pred_region
      _
    $region25: #{tpu_custom_call.1} parent=1 // pred_fallthru
      _
    // Predicated region
    $region26: #{tpu_custom_call.1} parent=1 // pred_check
      _
    $region27: #{tpu_custom_call.1} parent=1 // pred_check_branch
      %69 = sbr.rel (0) target = $region29
    $region28: #{tpu_custom_call.1} parent=1 // pred_region
      _
    $region29: #{tpu_custom_call.1} parent=1 // pred_fallthru
      _
    // Predicated region
    $region30: #{tpu_custom_call.1} parent=1 // pred_check
      _
    $region31: #{tpu_custom_call.1} parent=1 // pred_check_branch
      %71 = sbr.rel (0) target = $region33
    $region32: #{tpu_custom_call.1} parent=1 // pred_region
      %73 = dma.done [#allocation4], 128
    $region33: #{tpu_custom_call.1} parent=1 // pred_fallthru
      _
    // Predicated region
    $region34: #{tpu_custom_call.1} parent=1 // pred_check
      _
    $region35: #{tpu_custom_call.1} parent=1 // pred_check_branch
      %75 = sbr.rel (0) target = $region37
    $region36: #{tpu_custom_call.1} parent=1 // pred_region
      %77 = dma.done [#allocation6], 128
    $region37: #{tpu_custom_call.1} parent=1 // pred_fallthru
      _
    // Predicated region
    $region38: #{tpu_custom_call.1} parent=1 // pred_check
      _
    $region39: #{tpu_custom_call.1} parent=1 // pred_check_branch
      %79 = sbr.rel (0) target = $region41
    $region40: #{tpu_custom_call.1} parent=1 // pred_region
      %81 = dma.done [#allocation6], 512
    $region41: #{tpu_custom_call.1} parent=1 // pred_fallthru
      _
    // Predicated region
    $region42: #{tpu_custom_call.1} parent=1 // pred_check
      _
    $region43: #{tpu_custom_call.1} parent=1 // pred_check_branch
      %83 = sbr.rel (0) target = $region45
    $region44: #{tpu_custom_call.1} parent=1 // pred_region
      %85 = dma.done [#allocation9], 512
    $region45: #{tpu_custom_call.1} parent=1 // pred_fallthru
      _
    %v86 = vld [vmem:[#allocation3] sm:$0xff]
    %v87 = vld [vmem:[#allocation7] sm:$0xff]
    %v88 = vld [vmem:[#allocation7 + $0x8] sm:$0xff]
    %v89 = vld [vmem:[#allocation7 + $0x10] sm:$0xff]
    %v90 = vld [vmem:[#allocation7 + $0x18] sm:$0xff]
    %v91 = vld [vmem:[#allocation5] sm:$0xff]
    %v92 = vld [vmem:[#allocation8] sm:$0xff]
    %v93 = vld [vmem:[#allocation8 + $0x8] sm:$0xff]
    %v94 = vld [vmem:[#allocation8 + $0x10] sm:$0xff]
    %v95 = vld [vmem:[#allocation8 + $0x18] sm:$0xff]
    %vm96 = vcmask 261120
    %v98 = vsel %vm96, %v91, 0
    %100 = vmatpush.msra.mxu0 0.0
    %101 = vmatpush.msra.mxu0 0.0
    %102 = vmatpush.msra.mxu0 0.0
    %103 = vmatpush.msra.mxu0 0.0
    %104 = vmatpush.msra.mxu0 0.0
    %105 = vmatpush.msra.mxu0 0.0
    %106 = vmatpush.msra.mxu0 0.0
    %107 = vmatpush.msra.mxu0 0.0
    %108 = vmatpush.msra.mxu0 0.0
    %109 = vmatpush.msra.mxu0 0.0
    %110 = vmatpush.msra.mxu0 0.0
    %111 = vmatpush.msra.mxu0 0.0
    %112 = vmatpush.msra.mxu0 %v95
    %113 = vmatpush.msra.mxu0 %v94
    %114 = vmatpush.msra.mxu0 %v93
    %115 = vmatpush.msra.mxu0 %v92
    %116 = vmatmul.f32.gmra.mxu0 %v98
    %v117 = vpop.f32.mrf.mxu0
    %v118 = vadd.f32 0.0, %v117
    %119 = vdwg.mxu0
    %v121 = vsel %vm96, %v86, 0
    %123 = vmatpush.msra.mxu0 0.0
    %124 = vmatpush.msra.mxu0 0.0
    %125 = vmatpush.msra.mxu0 0.0
    %126 = vmatpush.msra.mxu0 0.0
    %127 = vmatpush.msra.mxu0 0.0
    %128 = vmatpush.msra.mxu0 0.0
    %129 = vmatpush.msra.mxu0 0.0
    %130 = vmatpush.msra.mxu0 0.0
    %131 = vmatpush.msra.mxu0 0.0
    %132 = vmatpush.msra.mxu0 0.0
    %133 = vmatpush.msra.mxu0 0.0
    %134 = vmatpush.msra.mxu0 0.0
    %135 = vmatpush.msra.mxu0 %v90
    %136 = vmatpush.msra.mxu0 %v89
    %137 = vmatpush.msra.mxu0 %v88
    %138 = vmatpush.msra.mxu0 %v87
    %139 = vmatmul.f32.gmra.mxu0 %v121
    %v140 = vpop.f32.mrf.mxu0
    %v141 = vadd.f32 %v118, %v140
    %142 = vdwg.mxu0
    %v143 = vld [vmem:[%s4] sm:$0x1]
    %v145 = vperm.slane %v143, 0
    %v147 = vadd.f32 %v141, %v145
    %v148 = vmax.f32 %v147, 0.0
    %v149 = vld [vmem:[%s5] sm:$0x1]
    %v151 = vperm.slane %v149, 0
    %v153 = vmul.f32 %v148, %v151
    %154 = vadd.xlane.f32.xlu0 %v153
    %v155 = vpop.xlane.xlu0 %154
    %s156 = sld [smem:[#allocation2]]
    %v157 = vstv %s156
    %v158 = vadd.f32 %v155, %v157
    %vm159 = vcmask 7168
    %160 = vst.msk [vmem:[%s7] sm:$0xff] %vm159, %v158
    // Predicated region
    $region46: #{tpu_custom_call.1} parent=1 // pred_check
      _
    $region47: #{tpu_custom_call.1} parent=1 // pred_check_branch
      %162 = sbr.rel (0) target = $region49
    $region48: #{tpu_custom_call.1} parent=1 // pred_region
      _
    $region49: #{tpu_custom_call.1} parent=1 // pred_fallthru
      _
    // Predicated region
    $region50: #{tpu_custom_call.1} parent=1 // pred_check
      _
    $region51: #{tpu_custom_call.1} parent=1 // pred_check_branch
      %164 = sbr.rel (0) target = $region53
    $region52: #{tpu_custom_call.1} parent=1 // pred_region
      _
    $region53: #{tpu_custom_call.1} parent=1 // pred_fallthru
      _
    %165 = vsyncpa [#allocation4], 1
    %166 = vsyncpa [#allocation6], 1
    %167 = vsyncpa [#allocation9], 1

</llo_original>
